<compile_context>
chip_gen: v5e
topology: v5e:2x2
jax: 0.10.0
libtpu: 0.0.40
codegen_flags: <defaults>
</compile_context>

<pallas_src>
import functools

import numpy as np
import jax
import jax.numpy as jnp
from jax import lax
from jax.experimental import pallas as pl
from jax.experimental.pallas import tpu as pltpu

EPS = 1e-15

# Cap on how many int32 indices are scalar-prefetched into SMEM per kernel
# call (32768 * 4 B = 128 KiB).  Larger subsets are split into several
# pallas_call invocations by the wrapper.
_MAX_PREFETCH_ROWS = 32768


def _cdiv(a, b):
    return (a + b - 1) // b


def _round_up(x, m):
    return ((x + m - 1) // m) * m


@functools.lru_cache(maxsize=None)
def _vmem_capacity_bytes():
    """Physical VMEM of the local chip; conservative v7x value on failure."""
    try:
        return int(pltpu.get_tpu_info().vmem_capacity_bytes)
    except Exception:
        return 64 << 20  # v7x physical VMEM (smallest of the three targets)


def _vmem_limit_bytes():
    """Generation-aware scoped-VMEM limit: ~28 MiB on v7x (64 MiB physical),
    ~57 MiB on v5e/v6e (128 MiB physical)."""
    return int(min(_vmem_capacity_bytes() * 0.45, 100 << 20))


def _pick_rows_per_block(requested, n_rows, d, itemsize, budget_bytes):
    """Rows per grid step: sublane-full (multiple of 8), capped by the number
    of rows and by a per-buffer VMEM byte budget."""
    cap = max(8, ((int(budget_bytes) // (d * itemsize)) // 8) * 8)
    r = min(int(requested), _round_up(int(n_rows), 8), int(cap))
    return max(8, (r // 8) * 8)


def _unroll_for(r):
    return 16 if r % 16 == 0 else 8


def _validate_host_indices(rows, n_valid):
    """Best-effort torch.nn.Embedding parity: raise on out-of-range indices
    when the subset is concrete (not traced).  Traced inputs are clamped."""
    try:
        r = np.asarray(rows)
    except Exception:
        return
    if r.size == 0:
        return
    lo, hi = int(r.min()), int(r.max())
    if lo < 0 or hi >= int(n_valid):
        raise IndexError(
            f"subset indices out of range [0, {int(n_valid)}): "
            f"min={lo}, max={hi}")


# ----------------------------------------------------------------------------
# Kernel 1a: gather with the per-type sub-table resident in VMEM.
# ----------------------------------------------------------------------------
def _make_vmem_table_gather_kernel(row_start, n_table, rows_per_block):
    R = rows_per_block
    unroll = _unroll_for(R)

    def kernel(idx_ref, w_hbm, o_ref, tbl_ref, sem):
        # idx_ref: (n_pad,) int32 SMEM (scalar prefetch); indices relative to
        #          the sub-table, pre-clipped and padded to a multiple of R.
        # w_hbm  : (total, D) embedding table, left in HBM (pl.ANY).
        # o_ref  : (R, D) VMEM output block.
        # tbl_ref: (n_table, D) VMEM scratch holding the whole sub-table.

        # One bulk DMA of the contiguous sub-table on the first grid step;
        # the scratch persists across steps (grid axis is "arbitrary", i.e.
        # sequential, so later steps always see the loaded table).
        @pl.when(pl.program_id(0) == 0)
        def _():
            cp = pltpu.make_async_copy(
                w_hbm.at[pl.ds(row_start, n_table), :], tbl_ref, sem.at[0])
            cp.start()
            cp.wait()

        base = pl.program_id(0) * R

        def gather_one(j, carry):
            # Vector load + store per row (no per-row HBM DMA descriptors).
            o_ref[pl.ds(j, 1), :] = tbl_ref[pl.ds(idx_ref[base + j], 1), :]
            return carry

        lax.fori_loop(0, R, gather_one, 0, unroll=unroll)

    return kernel


# ----------------------------------------------------------------------------
# Kernel 1b: batched per-row DMA gather straight from HBM (big sub-tables).
# ----------------------------------------------------------------------------
def _make_hbm_gather_kernel(rows_per_block):
    R = rows_per_block
    unroll = _unroll_for(R)

    def kernel(idx_ref, w_hbm, o_ref, sem):
        # idx_ref: (n_pad,) int32 SMEM; *absolute* row ids, pre-clipped and
        #          padded to a multiple of R (no in-kernel clamp needed).
        base = pl.program_id(0) * R

        def start_one(j, carry):
            row = idx_ref[base + j]
            pltpu.make_async_copy(
                w_hbm.at[pl.ds(row, 1), :],
                o_ref.at[pl.ds(j, 1), :],
                sem.at[0],
            ).start()
            return carry

        def wait_one(j, carry):
            # Rebuild the *identical* descriptor (same src/dst/sem) so the
            # wait's expected completion amount always matches the copy.
            row = idx_ref[base + j]
            pltpu.make_async_copy(
                w_hbm.at[pl.ds(row, 1), :],
                o_ref.at[pl.ds(j, 1), :],
                sem.at[0],
            ).wait()
            return carry

        # Keep all R row-DMAs in flight (single shared semaphore) before
        # waiting on any of them, then drain in issue order.
        lax.fori_loop(0, R, start_one, 0, unroll=unroll)
        lax.fori_loop(0, R, wait_one, 0, unroll=unroll)

    return kernel


def _gather_chunk(weight, rows, row_start, n_table, rows_per_block,
                  max_table_vmem_bytes):
    n = int(rows.shape[0])
    d = weight.shape[1]
    itemsize = jnp.dtype(weight.dtype).itemsize
    limit = _vmem_limit_bytes()

    # Does the per-type sub-table fit in VMEM (leaving headroom for the
    # double-buffered output blocks)?
    table_bytes = _round_up(int(n_table), 8) * d * itemsize
    table_budget = max(2 << 20, limit - (6 << 20))
    if max_table_vmem_bytes is not None:
        table_budget = min(table_budget, int(max_table_vmem_bytes))
    use_vmem_table = table_bytes <= table_budget

    if use_vmem_table:
        out_budget = max(1 << 20, (limit - table_bytes) // 3)
    else:
        out_budget = limit // 3
    R = _pick_rows_per_block(rows_per_block, n, d, itemsize, out_budget)
    grid = _cdiv(n, R)
    n_pad = grid * R

    # Pad indices with a valid row (0) so every index block is full; the
    # padded rows land only in the last partial output block, whose extra
    # rows are masked on writeback by the pipeline.
    if n_pad != n:
        rows = jnp.pad(rows, (0, n_pad - n))

    if use_vmem_table:
        kernel = _make_vmem_table_gather_kernel(int(row_start), int(n_table), R)
        scratch = [pltpu.VMEM((int(n_table), d), weight.dtype),
                   pltpu.SemaphoreType.DMA((1,))]
        semantics = ("arbitrary",)   # table is loaded once at grid step 0
    else:
        rows = rows + jnp.int32(row_start)   # absolute row ids for HBM DMAs
        kernel = _make_hbm_gather_kernel(R)
        scratch = [pltpu.SemaphoreType.DMA((1,))]
        semantics = ("parallel",)    # disjoint output blocks, no carried state

    grid_spec = pltpu.PrefetchScalarGridSpec(
        num_scalar_prefetch=1,
        grid=(grid,),
        in_specs=[pl.BlockSpec(memory_space=pl.ANY)],     # table stays in HBM
        out_specs=pl.BlockSpec((R, d), lambda i, idx: (i, 0)),
        scratch_shapes=scratch,
    )
    return pl.pallas_call(
        kernel,
        out_shape=jax.ShapeDtypeStruct((n, d), weight.dtype),
        grid_spec=grid_spec,
        compiler_params=pltpu.CompilerParams(
            dimension_semantics=semantics,
            vmem_limit_bytes=limit,
        ),
    )(rows, weight)


def embedding_gather(weight, rows, *, row_start=0, n_table=None,
                     rows_per_block=1024, max_table_vmem_bytes=None):
    """Returns weight[row_start + rows] where `rows` are indices relative to
    the per-type sub-table weight[row_start : row_start + n_table]."""
    total, d = weight.shape
    if n_table is None:
        n_table = total - int(row_start)
    rows = jnp.asarray(rows, dtype=jnp.int32)
    n = int(rows.shape[0])
    if n == 0:
        return jnp.zeros((0, d), weight.dtype)

    # TODO(synk): torch.nn.Embedding raises on out-of-range indices; inside
    # the kernel we can only clamp (a bad absolute index must never fault the
    # DMA engine).  Concrete (non-traced) inputs are validated host-side.
    _validate_host_indices(rows, n_table)
    rows = jnp.clip(rows, 0, n_table - 1)

    if n <= _MAX_PREFETCH_ROWS:
        return _gather_chunk(weight, rows, row_start, n_table,
                             rows_per_block, max_table_vmem_bytes)

    # Very large subsets: split across calls so the scalar-prefetched index
    # array never exceeds ~128 KiB of SMEM.
    outs = []
    for off in range(0, n, _MAX_PREFETCH_ROWS):
        outs.append(_gather_chunk(
            weight, rows[off:off + _MAX_PREFETCH_ROWS], row_start, n_table,
            rows_per_block, max_table_vmem_bytes))
    return jnp.concatenate(outs, axis=0)


# ----------------------------------------------------------------------------
# Kernel 2: contiguous slice copy (subset == None path).
# ----------------------------------------------------------------------------
def _make_slice_kernel(row_start, length, rows_per_block):
    RB = rows_per_block
    nblocks = _cdiv(length, RB)
    tail = length - (nblocks - 1) * RB     # rows in the last block (1..RB)

    def kernel(w_hbm, o_ref, sem):
        i = pl.program_id(0)
        base = row_start + i * RB

        # The VMEM->HBM writeback of block i-1 overlaps this block's read,
        # so the copy runs near the HBM roofline with multi-MiB blocks.
        if tail == RB:
            # Every block is full: one large contiguous DMA per grid step.
            cp = pltpu.make_async_copy(
                w_hbm.at[pl.ds(base, RB), :], o_ref, sem.at[0])
            cp.start()
            cp.wait()
        else:
            @pl.when(i < nblocks - 1)
            def _():
                cp = pltpu.make_async_copy(
                    w_hbm.at[pl.ds(base, RB), :], o_ref, sem.at[0])
                cp.start()
                cp.wait()

            # Tail block: a single statically-sized contiguous DMA of the
            # valid remainder (tail is a Python int); rows past `tail` of the
            # partial output block are masked on writeback.
            @pl.when(i == nblocks - 1)
            def _():
                cp = pltpu.make_async_copy(
                    w_hbm.at[pl.ds(base, tail), :],
                    o_ref.at[pl.ds(0, tail), :],
                    sem.at[0])
                cp.start()
                cp.wait()

    return kernel


def embedding_slice(weight, row_start, length, rows_per_block=8192):
    """Returns weight[row_start:row_start+length] via a contiguous block-copy
    Pallas kernel (no gather needed for the subset=None path)."""
    total, d = weight.shape
    length = int(length)
    row_start = int(row_start)
    if length == 0:
        return jnp.zeros((0, d), weight.dtype)
    assert 0 <= row_start and row_start + length <= total

    itemsize = jnp.dtype(weight.dtype).itemsize
    limit = _vmem_limit_bytes()
    RB = _pick_rows_per_block(rows_per_block, length, d, itemsize, limit // 3)
    grid = _cdiv(length, RB)

    grid_spec = pltpu.PrefetchScalarGridSpec(
        num_scalar_prefetch=0,
        grid=(grid,),
        in_specs=[pl.BlockSpec(memory_space=pl.ANY)],
        out_specs=pl.BlockSpec((RB, d), lambda i: (i, 0)),
        scratch_shapes=[pltpu.SemaphoreType.DMA((1,))],
    )
    return pl.pallas_call(
        _make_slice_kernel(row_start, length, RB),
        out_shape=jax.ShapeDtypeStruct((length, d), weight.dtype),
        grid_spec=grid_spec,
        compiler_params=pltpu.CompilerParams(
            dimension_semantics=("parallel",),
            vmem_limit_bytes=limit,
        ),
    )(weight)


# ----------------------------------------------------------------------------
# JAX port of the MetaPath2Vec module (forward path only).
# ----------------------------------------------------------------------------
class MetaPath2VecJax:
    def __init__(self, edge_index_dict, embedding_dim, metapath, walk_length,
                 context_size, walks_per_node=1, num_negative_samples=1,
                 num_nodes_dict=None, key=None,
                 gather_rows_per_block=1024, slice_rows_per_block=8192):
        if num_nodes_dict is None:
            num_nodes_dict = {}
            for keys, edge_index in edge_index_dict.items():
                k = keys[0]
                N = int(edge_index[0].max() + 1)
                num_nodes_dict[k] = max(N, num_nodes_dict.get(k, N))
                k = keys[-1]
                N = int(edge_index[1].max() + 1)
                num_nodes_dict[k] = max(N, num_nodes_dict.get(k, N))

        # TODO(synk): adj_dict / SparseTensor random-walk sampling (used only
        # by loss(), not forward()) has no clean Pallas equivalent.
        self.embedding_dim = embedding_dim
        self.metapath = metapath
        assert metapath[0][0] == metapath[-1][-1]
        self.walk_length = walk_length
        self.context_size = context_size
        self.walks_per_node = walks_per_node
        self.num_negative_samples = num_negative_samples
        self.num_nodes_dict = num_nodes_dict
        self.gather_rows_per_block = gather_rows_per_block
        self.slice_rows_per_block = slice_rows_per_block

        types = set([x[0] for x in metapath]) | set([x[-1] for x in metapath])
        types = sorted(list(types))
        count = 0
        self.start, self.end = {}, {}
        for k in types:
            self.start[k] = count
            count += num_nodes_dict[k]
            self.end[k] = count

        offset = [self.start[metapath[0][0]]]
        offset += [self.start[keys[-1]] for keys in metapath] * int(
            walk_length / len(metapath) + 1)
        offset = offset[:walk_length + 1]
        assert len(offset) == walk_length + 1
        self.offset = jnp.asarray(offset, dtype=jnp.int32)

        # torch.nn.Embedding.reset_parameters() -> weight ~ N(0, 1).
        if key is None:
            key = jax.random.PRNGKey(0)
        self.embedding_weight = jax.random.normal(
            key, (count, embedding_dim), dtype=jnp.float32)

    def forward(self, node_type, subset=None):
        """Returns the embeddings for the nodes in `subset` of type
        `node_type` (subset indices are relative to that node type)."""
        s = self.start[node_type]
        e = self.end[node_type]
        if subset is None:
            # Contiguous per-type slice: no gather needed.
            return embedding_slice(self.embedding_weight, s, e - s,
                                   rows_per_block=self.slice_rows_per_block)
        return embedding_gather(
            self.embedding_weight, jnp.asarray(subset, dtype=jnp.int32),
            row_start=s, n_table=e - s,
            rows_per_block=self.gather_rows_per_block)

    __call__ = forward


# ----------------------------------------------------------------------------
# Demo / self-check.
# ----------------------------------------------------------------------------
if __name__ == "__main__":
    key = jax.random.PRNGKey(0)

    # Small synthetic heterogeneous graph: author -> paper -> author metapath.
    num_authors, num_papers = 12, 20
    rng = np.random.RandomState(0)
    ap_src = rng.randint(0, num_authors, size=40)
    ap_dst = rng.randint(0, num_papers, size=40)
    edge_index_dict = {
        ('author', 'writes', 'paper'): np.stack([ap_src, ap_dst]),
        ('paper', 'written_by', 'author'): np.stack([ap_dst, ap_src]),
    }
    metapath = [('author', 'writes', 'paper'),
                ('paper', 'written_by', 'author')]

    embedding_dim = 128  # lane-aligned
    model = MetaPath2VecJax(
        edge_index_dict,
        embedding_dim=embedding_dim,
        metapath=metapath,
        walk_length=4,
        context_size=3,
        walks_per_node=1,
        num_negative_samples=1,
        num_nodes_dict={'author': num_authors, 'paper': num_papers},
        key=key,
        gather_rows_per_block=8,   # small so the demo exercises several blocks
        slice_rows_per_block=8,
    )

    w = model.embedding_weight
    s_a, e_a = model.start['author'], model.end['author']
    s_p, e_p = model.start['paper'], model.end['paper']

    # 1) forward(node_type, subset): VMEM-resident sub-table gather path
    #    (duplicate indices, several blocks, partial last block, and a
    #    non-zero per-type offset for 'paper').
    subset_a = jnp.array([3, 7, 0, 11, 5, 2, 9, 1, 4, 10,
                          6, 8, 3, 0, 11, 7, 2, 5, 9, 6], dtype=jnp.int32)
    subset_p = jnp.array([19, 0, 7, 13, 4, 7, 2, 18, 11, 5, 9, 16, 1],
                         dtype=jnp.int32)
    out_a_sub = jax.block_until_ready(model('author', subset_a))
    out_p_sub = jax.block_until_ready(model('paper', subset_p))

    # 2) Same gathers, forcing the HBM per-row-DMA path (as if the per-type
    #    sub-table did not fit in VMEM).
    out_a_sub_hbm = jax.block_until_ready(embedding_gather(
        w, subset_a, row_start=s_a, n_table=num_authors,
        rows_per_block=8, max_table_vmem_bytes=0))
    out_p_sub_hbm = jax.block_until_ready(embedding_gather(
        w, subset_p, row_start=s_p, n_table=num_papers,
        rows_per_block=8, max_table_vmem_bytes=0))

    # 3) forward(node_type) with subset=None: contiguous copy kernel.
    #    author: aligned start, full block + static tail block.
    #    paper : unaligned start (row 12), several blocks + tail block.
    out_a_all = jax.block_until_ready(model('author'))
    out_p_all = jax.block_until_ready(model('paper'))

    # Reference checks (pure JAX slice / gather) -- exact equality.
    ref_a_sub = w[s_a:e_a][np.asarray(subset_a)]
    ref_p_sub = w[s_p:e_p][np.asarray(subset_p)]
    ref_a_all = w[s_a:e_a]
    ref_p_all = w[s_p:e_p]

    np.testing.assert_array_equal(np.asarray(out_a_sub), np.asarray(ref_a_sub))
    np.testing.assert_array_equal(np.asarray(out_p_sub), np.asarray(ref_p_sub))
    np.testing.assert_array_equal(np.asarray(out_a_sub_hbm),
                                  np.asarray(ref_a_sub))
    np.testing.assert_array_equal(np.asarray(out_p_sub_hbm),
                                  np.asarray(ref_p_sub))
    np.testing.assert_array_equal(np.asarray(out_a_all), np.asarray(ref_a_all))
    np.testing.assert_array_equal(np.asarray(out_p_all), np.asarray(ref_p_all))

    assert out_a_sub.shape == (subset_a.shape[0], embedding_dim)
    assert out_p_sub.shape == (subset_p.shape[0], embedding_dim)
    assert out_a_all.shape == (num_authors, embedding_dim)
    assert out_p_all.shape == (num_papers, embedding_dim)
    assert out_a_sub.dtype == jnp.float32

    print("KERNEL_OK")
</pallas_src>

<mosaic_0001>
module attributes {stable_mosaic.version = 11 : i64} {
  func.func @kernel(%arg0: i32, %arg1: memref<24xi32, #tpu.memory_space<smem>>, %arg2: memref<32x128xf32, #tpu.memory_space<any>>, %arg3: memref<8x128xf32, #tpu.memory_space<vmem>>, %arg4: memref<12x128xf32, #tpu.memory_space<vmem>>, %arg5: memref<1x!tpu.dma_semaphore, #tpu.memory_space<semaphore_mem>>) attributes {dimension_semantics = [#tpu.dimension_semantics<arbitrary>], iteration_bounds = array<i64: 3>, scalar_prefetch = 1 : i64, scratch_operands = 2 : i64, tpu.core_type = #tpu.core_type<tc>, window_params = [{}, {transform_indices = @transform_1, window_bounds = array<i64: 8, 128>}]} {
    %c0_i32 = arith.constant 0 : i32
    %0 = arith.cmpi eq, %arg0, %c0_i32 : i32
    %1 = arith.extui %0 : i1 to i32
    %c0_i32_0 = arith.constant 0 : i32
    %2 = arith.cmpi ne, %1, %c0_i32_0 : i32
    scf.if %2 {
      %c0_i32_18 = arith.constant 0 : i32
      %c0_i32_19 = arith.constant 0 : i32
      %c0_i32_20 = arith.constant 0 : i32
      %60 = tpu.memref_slice %arg2[%c0_i32_19, %c0_i32_20] : memref<32x128xf32, #tpu.memory_space<any>> -> memref<12x128xf32, #tpu.memory_space<any>>
      %61 = tpu.memref_slice %arg5[%c0_i32_18] : memref<1x!tpu.dma_semaphore, #tpu.memory_space<semaphore_mem>> -> memref<1x!tpu.dma_semaphore, #tpu.memory_space<semaphore_mem>>
      %62 = tpu.memref_squeeze %61 : memref<1x!tpu.dma_semaphore, #tpu.memory_space<semaphore_mem>> -> memref<!tpu.dma_semaphore, #tpu.memory_space<semaphore_mem>>
      tpu.enqueue_dma source(%60 : memref<12x128xf32, #tpu.memory_space<any>>) target(%arg4 : memref<12x128xf32, #tpu.memory_space<vmem>>) target_semaphore(%62 : memref<!tpu.dma_semaphore, #tpu.memory_space<semaphore_mem>>)
      %c0_i32_21 = arith.constant 0 : i32
      %c0_i32_22 = arith.constant 0 : i32
      %c0_i32_23 = arith.constant 0 : i32
      %63 = tpu.memref_slice %arg2[%c0_i32_22, %c0_i32_23] : memref<32x128xf32, #tpu.memory_space<any>> -> memref<12x128xf32, #tpu.memory_space<any>>
      %64 = tpu.memref_slice %arg5[%c0_i32_21] : memref<1x!tpu.dma_semaphore, #tpu.memory_space<semaphore_mem>> -> memref<1x!tpu.dma_semaphore, #tpu.memory_space<semaphore_mem>>
      %65 = tpu.memref_squeeze %64 : memref<1x!tpu.dma_semaphore, #tpu.memory_space<semaphore_mem>> -> memref<!tpu.dma_semaphore, #tpu.memory_space<semaphore_mem>>
      tpu.wait_dma2 semaphore(%65 : memref<!tpu.dma_semaphore, #tpu.memory_space<semaphore_mem>>) src(%63 : memref<12x128xf32, #tpu.memory_space<any>>) dst(%arg4 : memref<12x128xf32, #tpu.memory_space<vmem>>)
    } else {
    }
    %c8_i32 = arith.constant 8 : i32
    %3 = arith.muli %arg0, %c8_i32 : i32
    %c0_i32_1 = arith.constant 0 : i32
    %4 = arith.addi %3, %c0_i32_1 : i32
    %5 = arith.index_cast %4 : i32 to index
    %6 = memref.load %arg1[%5] : memref<24xi32, #tpu.memory_space<smem>>
    %7 = arith.index_cast %6 : i32 to index
    %c0 = arith.constant 0 : index
    %8 = vector.load %arg4[%7, %c0] : memref<12x128xf32, #tpu.memory_space<vmem>>, vector<1x128xf32>
    %9 = arith.index_cast %c0_i32_1 : i32 to index
    %c0_2 = arith.constant 0 : index
    %10 = vector.load %arg3[%9, %c0_2] : memref<8x128xf32, #tpu.memory_space<vmem>>, vector<1x128xf32>
    tpu.vector_store %arg3[%9, %c0_2], %8 {strides = array<i32>} : memref<8x128xf32, #tpu.memory_space<vmem>>, vector<1x128xf32>,
    %c1_i32 = arith.constant 1 : i32
    %11 = arith.addi %3, %c1_i32 : i32
    %12 = arith.index_cast %11 : i32 to index
    %13 = memref.load %arg1[%12] : memref<24xi32, #tpu.memory_space<smem>>
    %14 = arith.index_cast %13 : i32 to index
    %c0_3 = arith.constant 0 : index
    %15 = vector.load %arg4[%14, %c0_3] : memref<12x128xf32, #tpu.memory_space<vmem>>, vector<1x128xf32>
    %16 = arith.index_cast %c1_i32 : i32 to index
    %c0_4 = arith.constant 0 : index
    %17 = vector.load %arg3[%16, %c0_4] : memref<8x128xf32, #tpu.memory_space<vmem>>, vector<1x128xf32>
    tpu.vector_store %arg3[%16, %c0_4], %15 {strides = array<i32>} : memref<8x128xf32, #tpu.memory_space<vmem>>, vector<1x128xf32>,
    %c2_i32 = arith.constant 2 : i32
    %18 = arith.addi %3, %c2_i32 : i32
    %19 = arith.index_cast %18 : i32 to index
    %20 = memref.load %arg1[%19] : memref<24xi32, #tpu.memory_space<smem>>
    %21 = arith.index_cast %20 : i32 to index
    %c0_5 = arith.constant 0 : index
    %22 = vector.load %arg4[%21, %c0_5] : memref<12x128xf32, #tpu.memory_space<vmem>>, vector<1x128xf32>
    %23 = arith.index_cast %c2_i32 : i32 to index
    %c0_6 = arith.constant 0 : index
    %24 = vector.load %arg3[%23, %c0_6] : memref<8x128xf32, #tpu.memory_space<vmem>>, vector<1x128xf32>
    tpu.vector_store %arg3[%23, %c0_6], %22 {strides = array<i32>} : memref<8x128xf32, #tpu.memory_space<vmem>>, vector<1x128xf32>,
    %c3_i32 = arith.constant 3 : i32
    %25 = arith.addi %3, %c3_i32 : i32
    %26 = arith.index_cast %25 : i32 to index
    %27 = memref.load %arg1[%26] : memref<24xi32, #tpu.memory_space<smem>>
    %28 = arith.index_cast %27 : i32 to index
    %c0_7 = arith.constant 0 : index
    %29 = vector.load %arg4[%28, %c0_7] : memref<12x128xf32, #tpu.memory_space<vmem>>, vector<1x128xf32>
    %30 = arith.index_cast %c3_i32 : i32 to index
    %c0_8 = arith.constant 0 : index
    %31 = vector.load %arg3[%30, %c0_8] : memref<8x128xf32, #tpu.memory_space<vmem>>, vector<1x128xf32>
    tpu.vector_store %arg3[%30, %c0_8], %29 {strides = array<i32>} : memref<8x128xf32, #tpu.memory_space<vmem>>, vector<1x128xf32>,
    %c4_i32 = arith.constant 4 : i32
    %32 = arith.addi %3, %c4_i32 : i32
    %33 = arith.index_cast %32 : i32 to index
    %34 = memref.load %arg1[%33] : memref<24xi32, #tpu.memory_space<smem>>
    %35 = arith.index_cast %34 : i32 to index
    %c0_9 = arith.constant 0 : index
    %36 = vector.load %arg4[%35, %c0_9] : memref<12x128xf32, #tpu.memory_space<vmem>>, vector<1x128xf32>
    %37 = arith.index_cast %c4_i32 : i32 to index
    %c0_10 = arith.constant 0 : index
    %38 = vector.load %arg3[%37, %c0_10] : memref<8x128xf32, #tpu.memory_space<vmem>>, vector<1x128xf32>
    tpu.vector_store %arg3[%37, %c0_10], %36 {strides = array<i32>} : memref<8x128xf32, #tpu.memory_space<vmem>>, vector<1x128xf32>,
    %c5_i32 = arith.constant 5 : i32
    %39 = arith.addi %3, %c5_i32 : i32
    %40 = arith.index_cast %39 : i32 to index
    %41 = memref.load %arg1[%40] : memref<24xi32, #tpu.memory_space<smem>>
    %42 = arith.index_cast %41 : i32 to index
    %c0_11 = arith.constant 0 : index
    %43 = vector.load %arg4[%42, %c0_11] : memref<12x128xf32, #tpu.memory_space<vmem>>, vector<1x128xf32>
    %44 = arith.index_cast %c5_i32 : i32 to index
    %c0_12 = arith.constant 0 : index
    %45 = vector.load %arg3[%44, %c0_12] : memref<8x128xf32, #tpu.memory_space<vmem>>, vector<1x128xf32>
    tpu.vector_store %arg3[%44, %c0_12], %43 {strides = array<i32>} : memref<8x128xf32, #tpu.memory_space<vmem>>, vector<1x128xf32>,
    %c6_i32 = arith.constant 6 : i32
    %46 = arith.addi %3, %c6_i32 : i32
    %47 = arith.index_cast %46 : i32 to index
    %48 = memref.load %arg1[%47] : memref<24xi32, #tpu.memory_space<smem>>
    %49 = arith.index_cast %48 : i32 to index
    %c0_13 = arith.constant 0 : index
    %50 = vector.load %arg4[%49, %c0_13] : memref<12x128xf32, #tpu.memory_space<vmem>>, vector<1x128xf32>
    %51 = arith.index_cast %c6_i32 : i32 to index
    %c0_14 = arith.constant 0 : index
    %52 = vector.load %arg3[%51, %c0_14] : memref<8x128xf32, #tpu.memory_space<vmem>>, vector<1x128xf32>
    tpu.vector_store %arg3[%51, %c0_14], %50 {strides = array<i32>} : memref<8x128xf32, #tpu.memory_space<vmem>>, vector<1x128xf32>,
    %c7_i32 = arith.constant 7 : i32
    %53 = arith.addi %3, %c7_i32 : i32
    %54 = arith.index_cast %53 : i32 to index
    %55 = memref.load %arg1[%54] : memref<24xi32, #tpu.memory_space<smem>>
    %56 = arith.index_cast %55 : i32 to index
    %c0_15 = arith.constant 0 : index
    %57 = vector.load %arg4[%56, %c0_15] : memref<12x128xf32, #tpu.memory_space<vmem>>, vector<1x128xf32>
    %58 = arith.index_cast %c7_i32 : i32 to index
    %c0_16 = arith.constant 0 : index
    %59 = vector.load %arg3[%58, %c0_16] : memref<8x128xf32, #tpu.memory_space<vmem>>, vector<1x128xf32>
    tpu.vector_store %arg3[%58, %c0_16], %57 {strides = array<i32>} : memref<8x128xf32, #tpu.memory_space<vmem>>, vector<1x128xf32>,
    %c8_i32_17 = arith.constant 8 : i32
    return
  }
  func.func @transform_1(%arg0: i32, %arg1: memref<24xi32, #tpu.memory_space<smem>>) -> (i32, i32) {
    %c0_i32 = arith.constant 0 : i32
    %c0_i32_0 = arith.constant 0 : i32
    return %arg0, %c0_i32 : i32, i32
  }
}

</mosaic_0001>

<llo_original>
// kernel: tpu_custom_call.1
$region0: #{tpu_custom_call.1}
  #allocation0 [shape = 'u32[]', space=smem, size = 0x4, offset = 0x4, fixed_abs, tag = 'smem constant byte address 0x4 - core index']
  #allocation1 [shape = 'u32[72,128]{1,0:T(1,128)}', space=vmem, size = 0x9000, scoped, tag = 'internal scratch']
  #allocation2 [shape = 'f32[12,128]{1,0:T(8,128)}', space=vmem, size = 0x2000, scoped, tag = 'scratch operand']
  #allocation3 [shape = 's32[1]{0}', space=sflag, size = 0x4, scoped, tag = 'scratch operand']
  #allocation4 [shape = 's32[1]{0}', space=sflag, size = 0x4, scoped, tag = 'scoped memory for tpu_custom_call.1']
  #allocation5 [shape = 'u8[512]{0}', space=smem, size = 0x200, scoped, tag = 'prefetched SMEM operand 0']
  #allocation8 [shape = 's32[]', space=sflag, size = 0x4, offset = 0, fixed_abs, tag = 'sflag constant byte address 0x0 - dummy sync flag']
  #allocation9 [shape = 's32[]', space=sflag, size = 0x4, offset = 0, fixed_abs, tag = 'sflag constant byte address 0x0 - dummy sync flag']
  #allocation10 [shape = 'u32[]', space=smem, size = 0x4, offset = 0x44, fixed_abs, tag = 'smem constant byte address 0x44 - assertion arg 0']
  #allocation11 [shape = 'u32[]', space=smem, size = 0x4, offset = 0x48, fixed_abs, tag = 'smem constant byte address 0x48 - assertion arg 1']
  %s0 = inlined_call_operand.hbm [shape: s32[24], index: 0, kind: input, shape index: {}]
  %s1 = inlined_call_operand.hbm [shape: f32[32,128], index: 1, kind: input, shape index: {}]
  %s2 = inlined_call_operand.hbm [shape: f32[20,128], index: 2, kind: output, shape index: {}]
  %s3 = sld [smem:[#allocation0]]
  $region33: #{tpu_custom_call.1} parent=0
    _
  %s5 = ssub.s32 1, %s3
  %s6 = scalar_select 0, %s5, %s3
  %s8 = sshll.u32 %s0, 4
  %s9 = int_to_ptr.hbm [resolvable:$true] %s8
  %11 = dma.hbm_to_smem %s9, 16, [#allocation5], [#allocation4]
  %13 = dma.done [#allocation4], 16
  %14 = sfence
  $region1: #{tpu_custom_call.1} parent=0
    #allocation6 [shape = 'u8[8192]{0}', space=vmem, size = 0x2000, scoped, tag = 'output window, operand 0']
    #allocation7 [shape = 's32[2]{0}', space=sflag, size = 0x8, scoped, tag = 'scoped memory for tpu_custom_call.1']
    %15 = vsyncpa [#allocation7], 0
    %s16 = scalar_lea.sflag [#allocation7], 1
    %17 = vsyncpa %s16, 0
    loop: start=0, step=1, limit=4
    $region2: #{tpu_custom_call.1} parent=1 // loop_pre_header
      _
    $region3: #{tpu_custom_call.1} parent=1 // loop_header
      %s19 = sphi 0, %s23
      %p20 = scmp.ge.s32.totalorder %s19, 4
      %s28 = sphi 0, %s30
      %s31 = sphi 0, %s28
      %s41 = sphi 0, %s31
    $region4: #{tpu_custom_call.1} parent=1 // loop_header_branch
      %22 = sbr.rel (%p20) target = $region8
    $region5: #{tpu_custom_call.1} parent=1 // loop_body
      %s24 = ssub.s32 %s19, 1
      %s25 = sadd.s32 %s19, 1
      %s26 = ssub.s32 %s19, %s25
      %p27 = scmp.eq.s32.totalorder %s26, 0
      %s29 = sadd.s32 %s28, 1
      %s30 = scalar_select %p27, %s28, %s29
      %p32 = pneg %p27
      %p33 = scmp.eq.s32.totalorder %s19, 2
      %p34 = por %p32, %p33
      %p35 = scmp.ne.s32.totalorder %s28, %s31
      %p36 = scmp.eq.s32.totalorder %s19, 0
      %p37 = por %p35, %p36
      %p38 = scmp.ne.s32.totalorder %s28, %s31
      %p39 = scmp.eq.s32.totalorder %s24, 2
      %p40 = por %p38, %p39
      %p42 = scmp.ne.s32.totalorder %s31, %s41
      %p43 = scmp.eq.s32.totalorder %s24, 0
      %p44 = por %p42, %p43
      %p45 = scmp.lt.s32.totalorder %s19, 3
      // Predicated region
      $region9: #{tpu_custom_call.1} parent=5 // pred_check
        %p46 = pneg %p45
      $region10: #{tpu_custom_call.1} parent=5 // pred_check_branch
        %48 = sbr.rel (%p46) target = $region12
      $region11: #{tpu_custom_call.1} parent=5 // pred_region
        %p49 = pneg %p37
        %p50 = pneg %p34
        %s51 = sand.u32 %s28, 1
        %s52 = scalar_lea.sflag [#allocation7], %s51
        %s53 = sand.u32 %s28, 1
        %s54 = smul.addr %s53, 8
        %s55 = scalar_lea.vmem [#allocation6], %s54
        %p56 = scmp.eq.s32.totalorder %s19, 0
        // Predicated region
        $region13: #{tpu_custom_call.1} parent=11 // pred_check
          %p57 = pneg %p56
        $region14: #{tpu_custom_call.1} parent=11 // pred_check_branch
          %59 = sbr.rel (%p57) target = $region16
        $region15: #{tpu_custom_call.1} parent=11 // pred_region
          // Predicated region
          $region17: #{tpu_custom_call.1} parent=15 // pred_check
            _
          $region18: #{tpu_custom_call.1} parent=15 // pred_check_branch
            %61 = sbr.rel target = $region20
          $region19: #{tpu_custom_call.1} parent=15 // pred_region
            %62 = sst [smem:[#allocation10]] [#allocation9]
            %63 = sst [smem:[#allocation11]] [#allocation8]
          $region20: #{tpu_custom_call.1} parent=15 // pred_fallthru
            _
          %65 = shalt.err (0)
          %s67 = sshll.u32 %s1, 4
          %s68 = int_to_ptr.hbm [resolvable:$true] %s67
          %s69 = sshll.u32 [#allocation2], 4
          %s70 = int_to_ptr.vmem [resolvable:$true] %s69
          %72 = dma.hbm_to_vmem [thread:$0]  %s68, 192, %s70, [#allocation3]
          %s73 = smul.u32 12, 1
          %s74 = sshll.u32 %s73, 4
          %75 = dma.done [#allocation3], %s74
        $region16: #{tpu_custom_call.1} parent=11 // pred_fallthru
          _
        %s76 = smul.u32 %s19, 8
        %s77 = sld [smem:[#allocation5 + %s76]]
        %s78 = scalar_lea.vmem [#allocation2], %s77
        %v79 = vld [vmem:[%s78] sm:$0x1]
        %80 = vst [vmem:[%s55] sm:$0x1] %v79
        %s81 = sadd.s32 %s76, 1
        %s82 = sld [smem:[#allocation5 + %s81]]
        %s83 = scalar_lea.vmem [#allocation2], %s82
        %v84 = vld [vmem:[%s83] sm:$0x1]
        %85 = vst [vmem:[%s55 + $0x1] sm:$0x1] %v84
        %s86 = sadd.s32 %s76, 2
        %s87 = sld [smem:[#allocation5 + %s86]]
        %s88 = scalar_lea.vmem [#allocation2], %s87
        %v89 = vld [vmem:[%s88] sm:$0x1]
        %90 = vst [vmem:[%s55 + $0x2] sm:$0x1] %v89
        %s91 = sadd.s32 %s76, 3
        %s92 = sld [smem:[#allocation5 + %s91]]
        %s93 = scalar_lea.vmem [#allocation2], %s92
        %v94 = vld [vmem:[%s93] sm:$0x1]
        %95 = vst [vmem:[%s55 + $0x3] sm:$0x1] %v94
        %s96 = sadd.s32 %s76, 4
        %s97 = sld [smem:[#allocation5 + %s96]]
        %s98 = scalar_lea.vmem [#allocation2], %s97
        %v99 = vld [vmem:[%s98] sm:$0x1]
        %100 = vst [vmem:[%s55 + $0x4] sm:$0x1] %v99
        %s101 = sadd.s32 %s76, 5
        %s102 = sld [smem:[#allocation5 + %s101]]
        %s103 = scalar_lea.vmem [#allocation2], %s102
        %v104 = vld [vmem:[%s103] sm:$0x1]
        %105 = vst [vmem:[%s55 + $0x5] sm:$0x1] %v104
        %s106 = sadd.s32 %s76, 6
        %s107 = sld [smem:[#allocation5 + %s106]]
        %s108 = scalar_lea.vmem [#allocation2], %s107
        %v109 = vld [vmem:[%s108] sm:$0x1]
        %110 = vst [vmem:[%s55 + $0x6] sm:$0x1] %v109
        %s111 = sadd.s32 %s76, 7
        %s112 = sld [smem:[#allocation5 + %s111]]
        %s113 = scalar_lea.vmem [#allocation2], %s112
        %v114 = vld [vmem:[%s113] sm:$0x1]
        %115 = vst [vmem:[%s55 + $0x7] sm:$0x1] %v114
        %s116 = sand.u32 %s28, 1
        %s117 = scalar_lea.sflag [#allocation7], %s116
        %s118 = sand.u32 %s28, 1
        %s119 = smul.addr %s118, 8
        %s120 = scalar_lea.vmem [#allocation6], %s119
        // Predicated region
        $region21: #{tpu_custom_call.1} parent=11 // pred_check
          %p121 = pneg %p34
        $region22: #{tpu_custom_call.1} parent=11 // pred_check_branch
          %123 = sbr.rel (%p121) target = $region24
        $region23: #{tpu_custom_call.1} parent=11 // pred_region
          %125 = vsyncadd %s117, 0
          %s126 = smul.addr %s19, 8
          %s127 = scalar_lea.hbm %s2, %s126
          %s129 = sshll.u32 %s120, 4
          %s130 = int_to_ptr.vmem [resolvable:$true] %s129
          %s131 = sshll.u32 %s127, 4
          %s132 = int_to_ptr.hbm [resolvable:$true] %s131
          %134 = dma.vmem_to_hbm [thread:$0]  %s130, 128, %s132, %s117
        $region24: #{tpu_custom_call.1} parent=11 // pred_fallthru
          _
      $region12: #{tpu_custom_call.1} parent=5 // pred_fallthru
        _
      %p135 = scmp.le.s32.totalorder 1, %s19
      // Predicated region
      $region25: #{tpu_custom_call.1} parent=5 // pred_check
        %p136 = pneg %p135
      $region26: #{tpu_custom_call.1} parent=5 // pred_check_branch
        %138 = sbr.rel (%p136) target = $region28
      $region27: #{tpu_custom_call.1} parent=5 // pred_region
        %s139 = ssub.s32 %s19, 1
        // Predicated region
        $region29: #{tpu_custom_call.1} parent=27 // pred_check
          %p140 = pneg %p40
        $region30: #{tpu_custom_call.1} parent=27 // pred_check_branch
          %142 = sbr.rel (%p140) target = $region32
        $region31: #{tpu_custom_call.1} parent=27 // pred_region
          %s143 = sand.u32 %s31, 1
          %s144 = scalar_lea.sflag [#allocation7], %s143
          %s145 = sand.u32 %s31, 1
          %s146 = smul.addr %s145, 8
          %s147 = scalar_lea.vmem [#allocation6], %s146
          %149 = dma.done %s144, 128
        $region32: #{tpu_custom_call.1} parent=27 // pred_fallthru
          _
      $region28: #{tpu_custom_call.1} parent=5 // pred_fallthru
        _
    $region6: #{tpu_custom_call.1} parent=1 // loop_footer
      %s23 = sadd.s32 1, %s19
    $region7: #{tpu_custom_call.1} parent=1 // loop_footer_branch
      %18 = sbr.rel target = $region3
    $region8: #{tpu_custom_call.1} parent=1 // loop_exit
      _
    %150 = vsyncpa [#allocation7], 1
    %s151 = scalar_lea.sflag [#allocation7], 1
    %152 = vsyncpa %s151, 1
  %153 = vsyncmov [#allocation3]
  %s154 = vpop.sfrf %153
  %p155 = scmp.eq.s32.totalorder %s154, 0
  %p156 = pneg %p155
  %158 = shalt.err (%p156)

</llo_original>
